<compile_context>
chip_gen: v7x
topology: tpu7x:2x2x1
jax: 0.10.0
libtpu: 0.0.40
codegen_flags: <defaults>
</compile_context>

<pallas_src>
import functools

import jax
import jax.numpy as jnp
from jax import lax
from jax.experimental import pallas as pl
from jax.experimental.pallas import tpu as pltpu

SUPCON_TEMPERATURE = 0.1     # SupervisedContrastiveLoss.temperature (default)
NTXENT_TEMPERATURE = 0.07    # hard-coded in forward(): losses.NTXentLoss(temperature=0.07)
_EPS = 1e-12                 # F.normalize eps


def _round_up(x, m):
    return ((x + m - 1) // m) * m


def _panel_kernel(a_ref, b_ref, lab_col_ref, lab_row_ref, loss_ref, cnt_ref,
                  *, n_valid, is_padded):
    """One anchor row-block: s = A_blk . B^T, per positive-pair NTXent terms, partial sums."""
    tm = a_ref.shape[0]
    n_pad = b_ref.shape[0]
    i = pl.program_id(0)

    # Cosine similarity of the SupCon logit rows, already scaled by 1/0.07 (folded into A).
    s = lax.dot_general(a_ref[...], b_ref[...], (((1,), (1,)), ((), ())),
                        preferred_element_type=jnp.float32)                 # [tm, n_pad]

    lab_c = lab_col_ref[...]                                                 # [tm, 1]
    lab_r = lab_row_ref[...]                                                 # [1, n_pad]
    same = lab_c == lab_r
    row_ids = i * tm + lax.broadcasted_iota(jnp.int32, (tm, 1), 0)
    col_ids = lax.broadcasted_iota(jnp.int32, (1, n_pad), 1)
    not_diag = row_ids != col_ids
    if is_padded:
        row_ok = row_ids < n_valid
        col_ok = col_ids < n_valid
        pos = jnp.logical_and(jnp.logical_and(same, not_diag),
                              jnp.logical_and(row_ok, col_ok))
        neg = jnp.logical_and(jnp.logical_not(same), col_ok)
    else:  # N % tm == 0: padding masks compiled out entirely
        pos = jnp.logical_and(same, not_diag)
        neg = jnp.logical_not(same)

    neg_s = jnp.where(neg, s, -jnp.inf)
    rmax = jnp.max(neg_s, axis=1, keepdims=True)                             # [tm, 1]
    safe_rmax = jnp.where(rmax != -jnp.inf, rmax, 0.0)                       # rows w/o negatives
    e = jnp.exp(s - safe_rmax)                       # single exp pass over the panel
    z = jnp.sum(jnp.where(neg, e, 0.0), axis=1, keepdims=True)               # [tm, 1]
    lse = jnp.log(e + z)                             # single log pass, no divide, no +TINY
    loss_sum = jnp.sum(jnp.where(pos, lse - (s - safe_rmax), 0.0))
    n_pos = jnp.sum(jnp.where(pos, 1.0, 0.0))

    ones_row = jnp.ones((1, loss_ref.shape[1]), jnp.float32)
    loss_ref[...] = ones_row * loss_sum
    cnt_ref[...] = ones_row * n_pos


def _device_defaults():
    try:
        kind = jax.devices()[0].device_kind.lower()
    except Exception:
        kind = ""
    # v5e MXU is 4x128x128 -> tm=256 buys nothing there; halve panel/vreg pressure instead.
    tm = 128 if ("v5e" in kind or "v5 lite" in kind or "v5litepod" in kind) else 256
    try:
        vmem_cap = int(pltpu.get_tpu_info().vmem_capacity_bytes)
    except Exception:
        vmem_cap = (64 if "v7" in kind else 128) * 2**20
    return tm, vmem_cap


def supervised_contrastive_loss(feature_vectors, labels):
    """feature_vectors: [N, D] float; labels: [N] or [N, 1] int. Returns scalar f32 loss."""
    feats = jnp.asarray(feature_vectors, jnp.float32)
    labs = jnp.squeeze(jnp.asarray(labels)).astype(jnp.int32)   # torch.squeeze(labels)
    if labs.ndim == 0:
        labs = labs.reshape(1)
    n, d = feats.shape

    # ---------------- one-time setup, hoisted to XLA (outside the kernel) ----------------
    # Xn = F.normalize(feats); L = Xn Xn^T / T1 (the SupCon logits); NTXent's cosine sim of
    # logit rows is  cos(L_i, L_j) = (Xn G Xn^T)_ij / (sqrt(msq_i) sqrt(msq_j)),
    # with G = Xn^T Xn and msq_i = (Xn G Xn^T)_ii.  So sim/T2 = A . B^T with
    #   A = (Xn G) * invd / T2,   B = Xn * invd,   invd_i = 1 / max(sqrt(msq_i), T1*eps).
    cn = jnp.maximum(jnp.sqrt(jnp.sum(feats * feats, axis=1, keepdims=True)), _EPS)
    xn = feats / cn
    g = lax.dot_general(xn, xn, (((0,), (0,)), ((), ())),
                        preferred_element_type=jnp.float32)                  # [D, D]
    h = jnp.dot(xn, g, preferred_element_type=jnp.float32)                    # [N, D]
    msq = jnp.sum(h * xn, axis=1, keepdims=True)                              # [N, 1]
    invd = 1.0 / jnp.maximum(jnp.sqrt(jnp.maximum(msq, 0.0)),
                             SUPCON_TEMPERATURE * _EPS)
    a_mat = h * (invd * (1.0 / NTXENT_TEMPERATURE))   # 1/T2 folded in (fused, free)
    b_mat = xn * invd

    # ---------------- padding: anchor row blocks (tm) and lane-dense D ----------------
    tm_default, vmem_cap = _device_defaults()
    tm = tm_default if n >= tm_default else _round_up(n, 8)
    n_pad = _round_up(n, tm)
    dp = _round_up(max(d, 128), 128)          # zero-pad D: norms/dots unchanged, lanes dense
    if n_pad != n or dp != d:
        a_mat = jnp.pad(a_mat, ((0, n_pad - n), (0, dp - d)))
        b_mat = jnp.pad(b_mat, ((0, n_pad - n), (0, dp - d)))
    labs_pad = labs if n_pad == n else jnp.pad(labs, (0, n_pad - n))
    lab_col = labs_pad.reshape(n_pad, 1)
    lab_row = labs_pad.reshape(1, n_pad)
    num_blocks = n_pad // tm
    is_padded = n_pad != n

    # ---------------- generation-aware VMEM budget ----------------
    # Resident B (x2 buffers), per-block A (x2), ~8 live [tm, n_pad] f32/bool panels,
    # label rows, tiny outputs.  Cap at 75% of physical VMEM (v7x: 48 MiB of 64 MiB).
    needed = 4 * (2 * n_pad * dp + 2 * tm * dp + 8 * tm * n_pad + 4 * n_pad + 2 * tm + 1024)
    vmem_limit = int(min(max(32 * 2**20, int(needed * 1.25)), int(vmem_cap * 0.75)))

    loss_part, cnt_part = pl.pallas_call(
        functools.partial(_panel_kernel, n_valid=n, is_padded=is_padded),
        out_shape=(jax.ShapeDtypeStruct((num_blocks, 128), jnp.float32),
                   jax.ShapeDtypeStruct((num_blocks, 128), jnp.float32)),
        grid=(num_blocks,),
        in_specs=[
            pl.BlockSpec((tm, dp), lambda i: (i, 0)),      # A row-block (pipelined per step)
            pl.BlockSpec((n_pad, dp), lambda i: (0, 0)),   # B (resident, constant block)
            pl.BlockSpec((tm, 1), lambda i: (i, 0)),       # labels of this anchor block
            pl.BlockSpec((1, n_pad), lambda i: (0, 0)),    # all labels (columns)
        ],
        out_specs=(pl.BlockSpec((1, 128), lambda i: (i, 0)),   # per-block loss sum
                   pl.BlockSpec((1, 128), lambda i: (i, 0))),  # per-block positive-pair count
        compiler_params=pltpu.CompilerParams(
            dimension_semantics=("parallel",),   # blocks independent -> megacore on v7x
            vmem_limit_bytes=vmem_limit,
        ),
    )(a_mat, b_mat, lab_col, lab_row)

    total = jnp.sum(loss_part[:, 0])
    npos = jnp.sum(cnt_part[:, 0])
    any_neg = jnp.any(labs != labs[0])           # any negative pair exists at all?
    ok = jnp.logical_and(npos > 0.0, any_neg)    # MeanReducer / zero_losses() behavior
    return jnp.where(ok, total / jnp.maximum(npos, 1.0), jnp.float32(0.0))


if __name__ == "__main__":
    key = jax.random.PRNGKey(0)
    kf, kl = jax.random.split(key)
    N, D = 8, 32
    feature_vectors = jax.random.normal(kf, (N, D), dtype=jnp.float32)
    labels = jax.random.randint(kl, (N, 1), 0, 3, dtype=jnp.int32)  # 3 classes -> pos & neg pairs

    loss = supervised_contrastive_loss(feature_vectors, labels)
    jax.block_until_ready(loss)
    assert loss.shape == () and bool(jnp.isfinite(loss))
    print("KERNEL_OK")
</pallas_src>

<mosaic_0001>
module attributes {stable_mosaic.version = 11 : i64} {
  func.func @_panel_kernel(%arg0: i32, %arg1: memref<8x128xf32, #tpu.memory_space<vmem>>, %arg2: memref<8x128xf32, #tpu.memory_space<vmem>>, %arg3: memref<8x1xi32, #tpu.memory_space<vmem>>, %arg4: memref<1x8xi32, #tpu.memory_space<vmem>>, %arg5: memref<1x128xf32, #tpu.memory_space<vmem>>, %arg6: memref<1x128xf32, #tpu.memory_space<vmem>>) attributes {dimension_semantics = [#tpu.dimension_semantics<parallel>], iteration_bounds = array<i64: 1>, scalar_prefetch = 0 : i64, scratch_operands = 0 : i64, tpu.core_type = #tpu.core_type<tc>, window_params = [{transform_indices = @transform_0, window_bounds = array<i64: 8, 128>}, {pipeline_mode = #tpu.pipeline_mode<synchronous>, transform_indices = @transform_1, window_bounds = array<i64: 8, 128>}, {transform_indices = @transform_2, window_bounds = array<i64: 8, 1>}, {pipeline_mode = #tpu.pipeline_mode<synchronous>, transform_indices = @transform_3, window_bounds = array<i64: 1, 8>}, {transform_indices = @transform_4, window_bounds = array<i64: 1, 128>}, {transform_indices = @transform_5, window_bounds = array<i64: 1, 128>}]} {
    %c0 = arith.constant 0 : index
    %c0_0 = arith.constant 0 : index
    %0 = vector.load %arg1[%c0, %c0_0] : memref<8x128xf32, #tpu.memory_space<vmem>>, vector<8x128xf32>
    %c0_1 = arith.constant 0 : index
    %c0_2 = arith.constant 0 : index
    %1 = vector.load %arg2[%c0_1, %c0_2] : memref<8x128xf32, #tpu.memory_space<vmem>>, vector<8x128xf32>
    %cst = arith.constant dense<0.000000e+00> : vector<8x8xf32>
    %2 = tpu.matmul %0, %1, %cst {dimension_numbers = #tpu.dot_dimension_numbers<[1], [1], [0], [0], [0, 0, 1, 0], [], []>} : vector<8x128xf32>, vector<8x128xf32>, vector<8x8xf32> -> vector<8x8xf32>
    %c0_3 = arith.constant 0 : index
    %c0_4 = arith.constant 0 : index
    %3 = vector.load %arg3[%c0_3, %c0_4] : memref<8x1xi32, #tpu.memory_space<vmem>>, vector<8x1xi32>
    %c0_5 = arith.constant 0 : index
    %c0_6 = arith.constant 0 : index
    %4 = vector.load %arg4[%c0_5, %c0_6] : memref<1x8xi32, #tpu.memory_space<vmem>>, vector<1x8xi32>
    %5 = vector.broadcast %3 : vector<8x1xi32> to vector<8x8xi32>
    %6 = vector.broadcast %4 : vector<1x8xi32> to vector<8x8xi32>
    %7 = arith.cmpi eq, %5, %6 : vector<8x8xi32>
    %c8_i32 = arith.constant 8 : i32
    %8 = arith.muli %arg0, %c8_i32 : i32
    %9 = tpu.iota {dimensions = array<i32: 0>} : vector<8x1xi32>
    %10 = vector.broadcast %8 : i32 to vector<8x1xi32>
    %11 = arith.addi %10, %9 : vector<8x1xi32>
    %12 = tpu.iota {dimensions = array<i32: 1>} : vector<1x8xi32>
    %13 = vector.broadcast %11 : vector<8x1xi32> to vector<8x8xi32>
    %14 = vector.broadcast %12 : vector<1x8xi32> to vector<8x8xi32>
    %15 = arith.cmpi ne, %13, %14 : vector<8x8xi32>
    %16 = arith.andi %7, %15 : vector<8x8xi1>
    %cst_7 = arith.constant dense<true> : vector<8x8xi1>
    %17 = arith.xori %7, %cst_7 : vector<8x8xi1>
    %cst_8 = arith.constant 0xFF800000 : f32
    %18 = vector.broadcast %cst_8 : f32 to vector<8x8xf32>
    %19 = arith.select %17, %2, %18 : vector<8x8xi1>, vector<8x8xf32>
    %cst_9 = arith.constant dense<0xFF800000> : vector<8xf32>
    %20 = vector.multi_reduction <maximumf>, %19, %cst_9 [1] : vector<8x8xf32> to vector<8xf32>
    %21 = vector.shape_cast %20 : vector<8xf32> to vector<8x1xf32>
    %cst_10 = arith.constant 0xFF800000 : f32
    %22 = vector.broadcast %cst_10 : f32 to vector<8x1xf32>
    %23 = arith.cmpf one, %21, %22 : vector<8x1xf32>
    %cst_11 = arith.constant 0.000000e+00 : f32
    %24 = vector.broadcast %cst_11 : f32 to vector<8x1xf32>
    %25 = arith.select %23, %21, %24 : vector<8x1xi1>, vector<8x1xf32>
    %26 = vector.broadcast %25 : vector<8x1xf32> to vector<8x8xf32>
    %27 = arith.subf %2, %26 : vector<8x8xf32>
    %28 = math.exp %27 : vector<8x8xf32>
    %cst_12 = arith.constant 0.000000e+00 : f32
    %29 = vector.broadcast %cst_12 : f32 to vector<8x8xf32>
    %30 = arith.select %17, %28, %29 : vector<8x8xi1>, vector<8x8xf32>
    %cst_13 = arith.constant dense<0.000000e+00> : vector<8xf32>
    %31 = vector.multi_reduction <add>, %30, %cst_13 [1] : vector<8x8xf32> to vector<8xf32>
    %32 = vector.shape_cast %31 : vector<8xf32> to vector<8x1xf32>
    %33 = vector.broadcast %32 : vector<8x1xf32> to vector<8x8xf32>
    %34 = arith.addf %28, %33 : vector<8x8xf32>
    %35 = math.log %34 : vector<8x8xf32>
    %36 = vector.broadcast %25 : vector<8x1xf32> to vector<8x8xf32>
    %37 = arith.subf %2, %36 : vector<8x8xf32>
    %38 = arith.subf %35, %37 : vector<8x8xf32>
    %cst_14 = arith.constant 0.000000e+00 : f32
    %39 = vector.broadcast %cst_14 : f32 to vector<8x8xf32>
    %40 = arith.select %16, %38, %39 : vector<8x8xi1>, vector<8x8xf32>
    %41 = vector.shape_cast %40 : vector<8x8xf32> to vector<1x8x8xf32>
    %cst_15 = arith.constant dense<0.000000e+00> : vector<1xf32>
    %42 = vector.multi_reduction <add>, %41, %cst_15 [1, 2] : vector<1x8x8xf32> to vector<1xf32>
    %43 = vector.shape_cast %42 : vector<1xf32> to vector<1x1x1xf32>
    %44 = vector.extract %43[0, 0, 0] : f32 from vector<1x1x1xf32>
    %cst_16 = arith.constant 1.000000e+00 : f32
    %cst_17 = arith.constant 0.000000e+00 : f32
    %45 = vector.broadcast %cst_16 : f32 to vector<8x8xf32>
    %46 = vector.broadcast %cst_17 : f32 to vector<8x8xf32>
    %47 = arith.select %16, %45, %46 : vector<8x8xi1>, vector<8x8xf32>
    %48 = vector.shape_cast %47 : vector<8x8xf32> to vector<1x8x8xf32>
    %cst_18 = arith.constant dense<0.000000e+00> : vector<1xf32>
    %49 = vector.multi_reduction <add>, %48, %cst_18 [1, 2] : vector<1x8x8xf32> to vector<1xf32>
    %50 = vector.shape_cast %49 : vector<1xf32> to vector<1x1x1xf32>
    %51 = vector.extract %50[0, 0, 0] : f32 from vector<1x1x1xf32>
    %cst_19 = arith.constant 1.000000e+00 : f32
    %52 = vector.broadcast %cst_19 : f32 to vector<1x128xf32>
    %53 = vector.broadcast %44 : f32 to vector<1x128xf32>
    %54 = arith.mulf %52, %53 : vector<1x128xf32>
    %c0_20 = arith.constant 0 : index
    %c0_21 = arith.constant 0 : index
    %55 = vector.load %arg5[%c0_20, %c0_21] : memref<1x128xf32, #tpu.memory_space<vmem>>, vector<1x128xf32>
    tpu.vector_store %arg5[%c0_20, %c0_21], %54 {strides = array<i32>} : memref<1x128xf32, #tpu.memory_space<vmem>>, vector<1x128xf32>,
    %56 = vector.broadcast %51 : f32 to vector<1x128xf32>
    %57 = arith.mulf %52, %56 : vector<1x128xf32>
    %c0_22 = arith.constant 0 : index
    %c0_23 = arith.constant 0 : index
    %58 = vector.load %arg6[%c0_22, %c0_23] : memref<1x128xf32, #tpu.memory_space<vmem>>, vector<1x128xf32>
    tpu.vector_store %arg6[%c0_22, %c0_23], %57 {strides = array<i32>} : memref<1x128xf32, #tpu.memory_space<vmem>>, vector<1x128xf32>,
    return
  }
  func.func @transform_0(%arg0: i32) -> (i32, i32) {
    %c0_i32 = arith.constant 0 : i32
    %c0_i32_0 = arith.constant 0 : i32
    return %arg0, %c0_i32 : i32, i32
  }
  func.func @transform_1(%arg0: i32) -> (i32, i32) {
    %c0_i32 = arith.constant 0 : i32
    %c0_i32_0 = arith.constant 0 : i32
    %c0_i32_1 = arith.constant 0 : i32
    return %c0_i32, %c0_i32_0 : i32, i32
  }
  func.func @transform_2(%arg0: i32) -> (i32, i32) {
    %c0_i32 = arith.constant 0 : i32
    %c0_i32_0 = arith.constant 0 : i32
    return %arg0, %c0_i32 : i32, i32
  }
  func.func @transform_3(%arg0: i32) -> (i32, i32) {
    %c0_i32 = arith.constant 0 : i32
    %c0_i32_0 = arith.constant 0 : i32
    %c0_i32_1 = arith.constant 0 : i32
    return %c0_i32, %c0_i32_0 : i32, i32
  }
  func.func @transform_4(%arg0: i32) -> (i32, i32) {
    %c0_i32 = arith.constant 0 : i32
    %c0_i32_0 = arith.constant 0 : i32
    return %arg0, %c0_i32 : i32, i32
  }
  func.func @transform_5(%arg0: i32) -> (i32, i32) {
    %c0_i32 = arith.constant 0 : i32
    %c0_i32_0 = arith.constant 0 : i32
    return %arg0, %c0_i32 : i32, i32
  }
}

</mosaic_0001>

<llo_original>
// kernel: tpu_custom_call.1
$region0: #{tpu_custom_call.1}
  #allocation0 [shape = 'u32[]', space=smem, size = 0x4, offset = 0x4, fixed_abs, tag = 'smem constant byte address 0x4 - core index']
  #allocation1 [shape = 'u32[144,128]{1,0:T(1,128)}', space=vmem, size = 0x12000, scoped, tag = 'internal scratch']
  %s0 = inlined_call_operand.vmem [shape: f32[8,128], index: 0, kind: input, shape index: {}]
  %s1 = inlined_call_operand.hbm [shape: f32[8,128], index: 1, kind: input, shape index: {}]
  %s2 = inlined_call_operand.vmem [shape: s32[8,1], index: 2, kind: input, shape index: {}]
  %s3 = inlined_call_operand.vmem [shape: s32[1,8], index: 3, kind: input, shape index: {}]
  %s4 = inlined_call_operand.hbm [shape: f32[1,128], index: 4, kind: output, shape index: {0}]
  %s5 = inlined_call_operand.hbm [shape: f32[1,128], index: 5, kind: output, shape index: {1}]
  %6 = xla_tuple %s4, %s5
  %s7 = sld [smem:[#allocation0]]
  $region38: #{tpu_custom_call.1} parent=0
    _
  %s9 = ssub.s32 1, %s7
  %s10 = scalar_select 0, %s9, %s7
  $region1: #{tpu_custom_call.1} parent=0
    #allocation2 [shape = 'u8[4096]{0}', space=vmem, size = 0x1000, scoped, tag = 'input window, operand 1, single buffered']
    #allocation3 [shape = 's32[1]{0}', space=sflag, size = 0x4, scoped, tag = 'scoped memory for tpu_custom_call.1']
    #allocation4 [shape = 's32[1]{0}', space=sflag, size = 0x4, scoped, tag = 'scoped memory for tpu_custom_call.1']
    #allocation5 [shape = 'u8[512]{0}', space=vmem, size = 0x400, scoped, tag = 'output window, operand 0, single buffered']
    #allocation6 [shape = 'u8[512]{0}', space=vmem, size = 0x400, scoped, tag = 'output window, operand 1, single buffered']
    #allocation7 [shape = 's32[1]{0}', space=sflag, size = 0x4, scoped, tag = 'scoped memory for tpu_custom_call.1']
    %11 = vsyncpa [#allocation3], 0
    %12 = vsyncpa [#allocation4], 0
    %13 = vsyncpa [#allocation7], 0
    // Predicated region
    $region2: #{tpu_custom_call.1} parent=1 // pred_check
      _
    $region3: #{tpu_custom_call.1} parent=1 // pred_check_branch
      %15 = sbr.rel (0) target = $region5
    $region4: #{tpu_custom_call.1} parent=1 // pred_region
      _
    $region5: #{tpu_custom_call.1} parent=1 // pred_fallthru
      _
    // Predicated region
    $region6: #{tpu_custom_call.1} parent=1 // pred_check
      _
    $region7: #{tpu_custom_call.1} parent=1 // pred_check_branch
      %17 = sbr.rel (0) target = $region9
    $region8: #{tpu_custom_call.1} parent=1 // pred_region
      %s19 = ssub.s32 128, 128
      %20 = vsyncadd [#allocation3], %s19
      %s22 = sshll.u32 [#allocation2], 4
      %s23 = int_to_ptr.vmem [resolvable:$true] %s22
      %25 = dma.hbm_to_vmem [thread:$0]  %s1, 128, %s23, [#allocation3]
    $region9: #{tpu_custom_call.1} parent=1 // pred_fallthru
      _
    // Predicated region
    $region10: #{tpu_custom_call.1} parent=1 // pred_check
      _
    $region11: #{tpu_custom_call.1} parent=1 // pred_check_branch
      %27 = sbr.rel (0) target = $region13
    $region12: #{tpu_custom_call.1} parent=1 // pred_region
      _
    $region13: #{tpu_custom_call.1} parent=1 // pred_fallthru
      _
    // Predicated region
    $region14: #{tpu_custom_call.1} parent=1 // pred_check
      _
    $region15: #{tpu_custom_call.1} parent=1 // pred_check_branch
      %29 = sbr.rel (0) target = $region17
    $region16: #{tpu_custom_call.1} parent=1 // pred_region
      _
    $region17: #{tpu_custom_call.1} parent=1 // pred_fallthru
      _
    // Predicated region
    $region18: #{tpu_custom_call.1} parent=1 // pred_check
      _
    $region19: #{tpu_custom_call.1} parent=1 // pred_check_branch
      %31 = sbr.rel (0) target = $region21
    $region20: #{tpu_custom_call.1} parent=1 // pred_region
      %32 = dma.done [#allocation3], 128
    $region21: #{tpu_custom_call.1} parent=1 // pred_fallthru
      _
    %v33 = vld [vmem:[%s0] sm:$0xff]
    %v34 = vld [vmem:[#allocation2] sm:$0xff]
    %35 = vmatprep.subr.mxu0 0.0
    %36 = vmatpush1.xpose.msra.mxu0 %v34
    %37 = vmatprep.subr.mxu0 0.0
    %38 = vmatpush1.xpose.msra.mxu0 0.0
    %39 = vmatprep.subr.mxu0 0.0
    %40 = vmatpush1.xpose.msra.mxu0 0.0
    %41 = vmatprep.subr.mxu0 0.0
    %42 = vmatpush1.xpose.msra.mxu0 0.0
    %43 = vmatprep.subr.mxu0 0.0
    %44 = vmatpush1.xpose.msra.mxu0 0.0
    %45 = vmatprep.subr.mxu0 0.0
    %46 = vmatpush1.xpose.msra.mxu0 0.0
    %47 = vmatprep.subr.mxu0 0.0
    %48 = vmatpush1.xpose.msra.mxu0 0.0
    %49 = vmatprep.subr.mxu0 0.0
    %50 = vmatpush1.xpose.msra.mxu0 0.0
    %51 = vmatprep.subr.mxu0 0.0
    %52 = vmatpush1.xpose.msra.mxu0 0.0
    %53 = vmatprep.subr.mxu0 0.0
    %54 = vmatpush1.xpose.msra.mxu0 0.0
    %55 = vmatprep.subr.mxu0 0.0
    %56 = vmatpush1.xpose.msra.mxu0 0.0
    %57 = vmatprep.subr.mxu0 0.0
    %58 = vmatpush1.xpose.msra.mxu0 0.0
    %59 = vmatprep.subr.mxu0 0.0
    %60 = vmatpush1.xpose.msra.mxu0 0.0
    %61 = vmatprep.subr.mxu0 0.0
    %62 = vmatpush1.xpose.msra.mxu0 0.0
    %63 = vmatprep.subr.mxu0 0.0
    %64 = vmatpush1.xpose.msra.mxu0 0.0
    %65 = vmatprep.subr.mxu0 0.0
    %66 = vmatpush1.xpose.msra.mxu0 0.0
    %67 = vmatprep.subr.mxu0 0.0
    %68 = vmatpush1.xpose.msra.mxu0 0.0
    %69 = vmatprep.subr.mxu0 0.0
    %70 = vmatpush1.xpose.msra.mxu0 0.0
    %71 = vmatprep.subr.mxu0 0.0
    %72 = vmatpush1.xpose.msra.mxu0 0.0
    %73 = vmatprep.subr.mxu0 0.0
    %74 = vmatpush1.xpose.msra.mxu0 0.0
    %75 = vmatprep.subr.mxu0 0.0
    %76 = vmatpush1.xpose.msra.mxu0 0.0
    %77 = vmatprep.subr.mxu0 0.0
    %78 = vmatpush1.xpose.msra.mxu0 0.0
    %79 = vmatprep.subr.mxu0 0.0
    %80 = vmatpush1.xpose.msra.mxu0 0.0
    %81 = vmatprep.subr.mxu0 0.0
    %82 = vmatpush1.xpose.msra.mxu0 0.0
    %83 = vmatprep.subr.mxu0 0.0
    %84 = vmatpush1.xpose.msra.mxu0 0.0
    %85 = vmatprep.subr.mxu0 0.0
    %86 = vmatpush1.xpose.msra.mxu0 0.0
    %87 = vmatprep.subr.mxu0 0.0
    %88 = vmatpush1.xpose.msra.mxu0 0.0
    %89 = vmatprep.subr.mxu0 0.0
    %90 = vmatpush1.xpose.msra.mxu0 0.0
    %91 = vmatprep.subr.mxu0 0.0
    %92 = vmatpush1.xpose.msra.mxu0 0.0
    %93 = vmatprep.subr.mxu0 0.0
    %94 = vmatpush1.xpose.msra.mxu0 0.0
    %95 = vmatprep.subr.mxu0 0.0
    %96 = vmatpush1.xpose.msra.mxu0 0.0
    %97 = vmatprep.subr.mxu0 0.0
    %98 = vmatpush1.xpose.msra.mxu0 0.0
    %99 = vmatprep.mubr.f32.mxu0 0.0
    %100 = vmatmul.mubr.f32.gmra.mrb[0].mxu0 %v33
    %v101 = vpop.f32.mrb[0].mxu0
    %v102 = vadd.f32 0.0, %v101
    %v103 = vpop.f32.mrb[0].mxu0
    %104 = vdwg.mxu0
    %v105 = vld [vmem:[%s2] sm:$0xff]
    %v106 = vld [vmem:[%s3] sm:$0x1]
    %107 = vset.pattern.permute.xlu0 0
    %108 = vperm.xlu0 %107, %v105
    %v109 = vpop.permute.xlu0 %108
    %v110 = vlaneseq
    %v111 = vshrl.u32 %v110, 7
    %v112 = vsub.s32 0, %v111
    %v113 = vrot.slane %v106, %v112
    %vm114 = vcmp.eq.s32.totalorder %v109, %v113
    %s115 = smul.u32 0, 8
    %v116 = vlaneseq
    %v117 = vshrl.u32 %v116, 7
    %v118 = vstv %s115
    %v119 = vadd.s32 %v118, %v117
    %v120 = vlaneseq
    %v121 = vand.u32 %v120, 127
    %vm122 = vcmp.ne.s32.totalorder %v119, %v121
    %vm123 = vmand %vm114, %vm122
    %vm124 = vmxor %vm114, 1
    %v125 = vsel %vm124, %v102, -inf
    %vm126 = vcmask 64512
    %v127 = vsel %vm126, %v125, -inf
    %128 = vmax.xlane.f32.xlu0 %v127
    %v129 = vpop.xlane.xlu0 %128
    %vm130 = vcmp.ne.f32.partialorder %v129, -inf
    %v131 = vsel %vm130, %v129, 0.0
    %v132 = vsub.f32 %v102, %v131
    %v133 = vmul.f32 %v132, 1.442695
    %v134 = vpow.pop %v133
    %v135 = vsel %vm124, %v134, 0.0
    %v136 = vsel %vm126, %v135, 0.0
    %137 = vadd.xlane.f32.xlu0 %v136
    %v138 = vpop.xlane.xlu0 %137
    %v139 = vadd.f32 %v134, %v138
    %v140 = vlog2.pop %v139
    %v141 = vmul.f32 %v140, 0.6931472
    %v142 = vsub.f32 %v141, %v132
    %v143 = vsel %vm123, %v142, 0.0
    %v144 = vsel %vm126, %v143, 0.0
    %145 = vadd.xlane.f32.xlu0 %v144
    %v146 = vpop.xlane.xlu0 %145
    %v147 = vrot.slane %v146, 4
    %v148 = vadd.f32 %v146, %v147
    %v149 = vrot.slane %v148, 2
    %v150 = vadd.f32 %v148, %v149
    %v151 = vrot.slane %v150, 1
    %v152 = vadd.f32 %v150, %v151
    %s153 = vtos %v152
    %v154 = vsel %vm123, 1.0, 0.0
    %v155 = vsel %vm126, %v154, 0.0
    %156 = vadd.xlane.f32.xlu0 %v155
    %v157 = vpop.xlane.xlu0 %156
    %v158 = vrot.slane %v157, 4
    %v159 = vadd.f32 %v157, %v158
    %v160 = vrot.slane %v159, 2
    %v161 = vadd.f32 %v159, %v160
    %v162 = vrot.slane %v161, 1
    %v163 = vadd.f32 %v161, %v162
    %s164 = vtos %v163
    %v165 = vstv %s153
    %166 = vst [vmem:[#allocation5] sm:$0x1] %v165
    %v167 = vstv %s164
    %168 = vst [vmem:[#allocation6] sm:$0x1] %v167
    // Predicated region
    $region22: #{tpu_custom_call.1} parent=1 // pred_check
      _
    $region23: #{tpu_custom_call.1} parent=1 // pred_check_branch
      %170 = sbr.rel (0) target = $region25
    $region24: #{tpu_custom_call.1} parent=1 // pred_region
      %s172 = ssub.s32 16, 16
      %173 = vsyncadd [#allocation4], %s172
      %s175 = sshll.u32 [#allocation5], 4
      %s176 = int_to_ptr.vmem [resolvable:$true] %s175
      %178 = dma.vmem_to_hbm [thread:$0]  %s176, 16, %s4, [#allocation4]
    $region25: #{tpu_custom_call.1} parent=1 // pred_fallthru
      _
    // Predicated region
    $region26: #{tpu_custom_call.1} parent=1 // pred_check
      _
    $region27: #{tpu_custom_call.1} parent=1 // pred_check_branch
      %180 = sbr.rel (0) target = $region29
    $region28: #{tpu_custom_call.1} parent=1 // pred_region
      %s182 = ssub.s32 16, 16
      %183 = vsyncadd [#allocation7], %s182
      %s185 = sshll.u32 [#allocation6], 4
      %s186 = int_to_ptr.vmem [resolvable:$true] %s185
      %188 = dma.vmem_to_hbm [thread:$0]  %s186, 16, %s5, [#allocation7]
    $region29: #{tpu_custom_call.1} parent=1 // pred_fallthru
      _
    // Predicated region
    $region30: #{tpu_custom_call.1} parent=1 // pred_check
      _
    $region31: #{tpu_custom_call.1} parent=1 // pred_check_branch
      %190 = sbr.rel (0) target = $region33
    $region32: #{tpu_custom_call.1} parent=1 // pred_region
      %191 = dma.done [#allocation4], 16
    $region33: #{tpu_custom_call.1} parent=1 // pred_fallthru
      _
    // Predicated region
    $region34: #{tpu_custom_call.1} parent=1 // pred_check
      _
    $region35: #{tpu_custom_call.1} parent=1 // pred_check_branch
      %193 = sbr.rel (0) target = $region37
    $region36: #{tpu_custom_call.1} parent=1 // pred_region
      %194 = dma.done [#allocation7], 16
    $region37: #{tpu_custom_call.1} parent=1 // pred_fallthru
      _
    %195 = vsyncpa [#allocation3], 1
    %196 = vsyncpa [#allocation4], 1
    %197 = vsyncpa [#allocation7], 1

</llo_original>
